<compile_context>
chip_gen: v7x
topology: tpu7x:2x2x1
jax: 0.10.0
libtpu: 0.0.40
codegen_flags: <defaults>
</compile_context>

<pallas_src>
import jax
import jax.numpy as jnp
from jax.experimental import pallas as pl
from jax.experimental.pallas import tpu as pltpu


# ----------------------------------------------------------------------------
# Kernel:  out = x * cos_full + roll(x, D/2) * sin_signed   (f32 compute)
#   roll(x, D/2) = [x2 | x1]; sin_signed = [-sin | sin]
#   => out = [x1*c - x2*s | x2*c + x1*s]  == x*cos + negate_half(x)*sin.
# ----------------------------------------------------------------------------
def _rope_kernel(x_ref, cos_ref, sin_ref, o_ref):
    # x_ref:   (BH_TILE, T_TILE, D)
    # cos_ref: (T_TILE, D) float32 (full width)
    # sin_ref: (T_TILE, D) float32 (full width, sign-folded)
    x = x_ref[...].astype(jnp.float32)
    half = x.shape[-1] // 2
    x_rot = pltpu.roll(x, shift=half, axis=2)      # positive (last) axis
    cos = cos_ref[...][None, :, :]
    sin = sin_ref[...][None, :, :]
    o_ref[...] = (x * cos + x_rot * sin).astype(o_ref.dtype)


# ----------------------------------------------------------------------------
# Generation-aware tile / VMEM planning.
# ----------------------------------------------------------------------------
def _vmem_capacity_bytes():
    try:
        return int(pltpu.get_tpu_info().vmem_capacity_bytes)
    except Exception:
        return 64 * 1024 * 1024   # conservative (v7x-sized) fallback


def _plan_tiles(bh, t, d, itemsize):
    vmem_cap = _vmem_capacity_bytes()
    budget = int(vmem_cap * 0.70)                 # headroom for compiler scratch
    # Per x-block VMEM ~ 2x(in) + 2x(out) dtype buffers + ~6 f32-block temps
    # (f32 cast, rolled copy, broadcast tables, products).
    factor = 4.0 + 6.0 * (4.0 / itemsize)
    preferred = (6 << 20) if vmem_cap >= (100 << 20) else (4 << 20)
    target = int(min(preferred, max(512 * 1024, budget / factor)))

    row_bytes = d * itemsize
    pack = max(8, 32 // itemsize)                 # 8 f32 / 16 bf16 / 32 int8 rows
    if t <= pack or t * row_bytes <= target:
        t_tile = t                                # full T (always a legal block)
    else:
        t_tile = max(pack, ((target // row_bytes) // pack) * pack)
        t_tile = min(t_tile, t)
    bh_tile = max(1, min(bh, target // max(1, t_tile * row_bytes)))

    # v7x has 2 TensorCores: keep >= 2 grid steps on a parallel axis even for
    # small inputs so the chip isn't half idle.  No effect on v5e/v6e.
    if pl.cdiv(t, t_tile) == 1 and bh_tile >= bh and bh >= 2:
        bh_tile = pl.cdiv(bh, 2)

    blk = bh_tile * t_tile * d * itemsize
    need = int(factor * blk) + 4 * t_tile * d * 4 + (4 << 20)
    vmem_limit = min(max(need, 32 << 20), int(vmem_cap * 0.75))
    return bh_tile, t_tile, int(vmem_limit)


# ----------------------------------------------------------------------------
# pallas_call wrapper: x_flat [BH, T, D]; cos_full / sin_signed [T, D] f32.
# ----------------------------------------------------------------------------
def _apply_rope_pallas(x_flat, cos_full, sin_signed):
    bh, t, d = x_flat.shape
    assert d % 2 == 0
    assert cos_full.shape == (t, d) and sin_signed.shape == (t, d)

    itemsize = jnp.dtype(x_flat.dtype).itemsize
    bh_tile, t_tile, vmem_limit = _plan_tiles(bh, t, d, itemsize)
    grid = (pl.cdiv(t, t_tile), pl.cdiv(bh, bh_tile))   # seq axis OUTER

    cost = pl.CostEstimate(
        flops=3 * bh * t * d,
        transcendentals=0,
        bytes_accessed=int(2 * x_flat.size * itemsize
                           + cos_full.size * 4 + sin_signed.size * 4),
    )

    return pl.pallas_call(
        _rope_kernel,
        out_shape=jax.ShapeDtypeStruct((bh, t, d), x_flat.dtype),
        grid_spec=pltpu.PrefetchScalarGridSpec(
            num_scalar_prefetch=0,
            grid=grid,
            in_specs=[
                pl.BlockSpec((bh_tile, t_tile, d), lambda ti, bi: (bi, ti, 0)),
                # Tables index only the (outer) seq axis -> stay resident
                # across the whole inner bh loop.
                pl.BlockSpec((t_tile, d), lambda ti, bi: (ti, 0)),
                pl.BlockSpec((t_tile, d), lambda ti, bi: (ti, 0)),
            ],
            out_specs=pl.BlockSpec((bh_tile, t_tile, d), lambda ti, bi: (bi, ti, 0)),
        ),
        compiler_params=pltpu.CompilerParams(
            dimension_semantics=("parallel", "parallel"),
            vmem_limit_bytes=vmem_limit,
        ),
        cost_estimate=cost,
    )(x_flat, cos_full, sin_signed)


# ----------------------------------------------------------------------------
# Module-equivalent wrapper (table construction is one-time JAX glue).
# ----------------------------------------------------------------------------
class RotaryEmbeddingPallas:
    def __init__(self, model_dim: int, max_seq_length: int, freq_constant: int = 10000):
        self.model_dim = model_dim
        self.max_seq_length = max_seq_length
        self.freq_constant = freq_constant
        self._cached_seq_length = 0
        self._build_tables(max_seq_length)

    def _build_tables(self, seq_len: int):
        inv_freq = 1.0 / (
            self.freq_constant
            ** (jnp.arange(0, self.model_dim, 2, dtype=jnp.float32) / self.model_dim)
        )
        pos = jnp.arange(seq_len, dtype=jnp.float32)
        theta = pos[:, None] * inv_freq[None, :]          # [S, D/2]
        cos_h = jnp.cos(theta)
        sin_h = jnp.sin(theta)
        # Full-width tables; negate-half sign folded into the sin table.
        self._cos = jnp.concatenate([cos_h, cos_h], axis=-1)          # [S, D]
        self._sin = jnp.concatenate([sin_h, sin_h], axis=-1)          # [S, D] (reference)
        self._sin_signed = jnp.concatenate([-sin_h, sin_h], axis=-1)  # [S, D] (kernel)
        self._cached_seq_length = seq_len

    # TODO(synk): optional key_pos_ids / query_pos_ids gather path of the
    # PyTorch module is not implemented (default positional path only).
    # TODO(synk): for D == 64, packing two heads along lanes (last dim 128)
    # would make stores fully lane-dense; not done here to keep roll simple.
    def __call__(self, query, key):
        # query: [B, Hq, Tq, D]; key: [B, Hk, Tk, D]
        b, hq, tq, d = query.shape
        _, hk, tk, _ = key.shape
        assert d == self.model_dim
        assert query.dtype == key.dtype
        assert tk >= tq, "Number of keys has to be >= number of queries."
        if tk > self._cached_seq_length:
            self._build_tables(tk)

        k_cos, k_sin = self._cos[:tk], self._sin_signed[:tk]
        # Default path: query occupies the LAST tq positions (matches the
        # PyTorch module: cached[..., key_len - query_len : key_len, :]).
        q_cos, q_sin = self._cos[tk - tq:tk], self._sin_signed[tk - tq:tk]

        q_out = _apply_rope_pallas(query.reshape(b * hq, tq, d), q_cos, q_sin)
        k_out = _apply_rope_pallas(key.reshape(b * hk, tk, d), k_cos, k_sin)
        return q_out.reshape(b, hq, tq, d), k_out.reshape(b, hk, tk, d)


# ----------------------------------------------------------------------------
# Pure-JAX reference (mirrors the PyTorch math exactly).
# ----------------------------------------------------------------------------
def _negate_half_ref(x):
    d = x.shape[-1]
    x1, x2 = x[..., : d // 2], x[..., d // 2:]
    return jnp.concatenate([-x2, x1], axis=-1)


def _rope_ref(x, cos, sin):
    xf = x.astype(jnp.float32)
    out = xf * cos[None, None] + _negate_half_ref(xf) * sin[None, None]
    return out.astype(x.dtype)


if __name__ == "__main__":
    B, Hq, Hk, T, D = 2, 4, 2, 8, 64
    max_seq = 16

    key0 = jax.random.PRNGKey(0)
    kq, kk, kq2 = jax.random.split(key0, 3)
    query = jax.random.normal(kq, (B, Hq, T, D), dtype=jnp.float32)
    key = jax.random.normal(kk, (B, Hk, T, D), dtype=jnp.float32)

    rope = RotaryEmbeddingPallas(model_dim=D, max_seq_length=max_seq)
    cos_full, sin_full = rope._cos, rope._sin

    # Case 1: Tq == Tk, float32.
    q_out, k_out = rope(query, key)
    jax.block_until_ready(q_out)
    jax.block_until_ready(k_out)
    q_ref = _rope_ref(query, cos_full[:T], sin_full[:T])
    k_ref = _rope_ref(key, cos_full[:T], sin_full[:T])
    assert jnp.allclose(q_out, q_ref, atol=1e-5, rtol=1e-5), "query mismatch"
    assert jnp.allclose(k_out, k_ref, atol=1e-5, rtol=1e-5), "key mismatch"
    assert q_out.shape == query.shape and q_out.dtype == query.dtype
    assert k_out.shape == key.shape and k_out.dtype == key.dtype

    # Case 2: Tq < Tk (decode-style; query uses the suffix positions).
    Tq2 = 4
    query2 = jax.random.normal(kq2, (B, Hq, Tq2, D), dtype=jnp.float32)
    q_out2, k_out2 = rope(query2, key)
    jax.block_until_ready(q_out2)
    jax.block_until_ready(k_out2)
    q_ref2 = _rope_ref(query2, cos_full[T - Tq2:T], sin_full[T - Tq2:T])
    k_ref2 = _rope_ref(key, cos_full[:T], sin_full[:T])
    assert jnp.allclose(q_out2, q_ref2, atol=1e-5, rtol=1e-5), "query (Tq<Tk) mismatch"
    assert jnp.allclose(k_out2, k_ref2, atol=1e-5, rtol=1e-5), "key (Tq<Tk) mismatch"

    # Case 3: bfloat16 inputs (f32 compute, cast back), Tq == Tk.
    query_bf = query.astype(jnp.bfloat16)
    key_bf = key.astype(jnp.bfloat16)
    q_out3, k_out3 = rope(query_bf, key_bf)
    jax.block_until_ready(q_out3)
    jax.block_until_ready(k_out3)
    q_ref3 = _rope_ref(query_bf, cos_full[:T], sin_full[:T])
    k_ref3 = _rope_ref(key_bf, cos_full[:T], sin_full[:T])
    assert q_out3.dtype == jnp.bfloat16 and k_out3.dtype == jnp.bfloat16
    assert jnp.allclose(q_out3.astype(jnp.float32), q_ref3.astype(jnp.float32),
                        atol=2e-2, rtol=2e-2), "query (bf16) mismatch"
    assert jnp.allclose(k_out3.astype(jnp.float32), k_ref3.astype(jnp.float32),
                        atol=2e-2, rtol=2e-2), "key (bf16) mismatch"

    print("KERNEL_OK")
</pallas_src>

<mosaic_0001>
module attributes {stable_mosaic.version = 11 : i64} {
  func.func @_rope_kernel(%arg0: i32, %arg1: i32, %arg2: memref<4x8x64xf32, #tpu.memory_space<vmem>>, %arg3: memref<8x64xf32, #tpu.memory_space<vmem>>, %arg4: memref<8x64xf32, #tpu.memory_space<vmem>>, %arg5: memref<4x8x64xf32, #tpu.memory_space<vmem>>) attributes {dimension_semantics = [#tpu.dimension_semantics<parallel>, #tpu.dimension_semantics<parallel>], iteration_bounds = array<i64: 1, 2>, scalar_prefetch = 0 : i64, scratch_operands = 0 : i64, tpu.core_type = #tpu.core_type<tc>, window_params = [{transform_indices = @transform_0, window_bounds = array<i64: 4, 8, 64>}, {transform_indices = @transform_1, window_bounds = array<i64: 8, 64>}, {transform_indices = @transform_2, window_bounds = array<i64: 8, 64>}, {transform_indices = @transform_3, window_bounds = array<i64: 4, 8, 64>}]} {
    %c0 = arith.constant 0 : index
    %c0_0 = arith.constant 0 : index
    %c0_1 = arith.constant 0 : index
    %0 = vector.load %arg2[%c0, %c0_0, %c0_1] : memref<4x8x64xf32, #tpu.memory_space<vmem>>, vector<4x8x64xf32>
    %c32_i32 = arith.constant 32 : i32
    %1 = tpu.dynamic_rotate %0 by %c32_i32 dim 2 : vector<4x8x64xf32>, i32 -> vector<4x8x64xf32>
    %c0_2 = arith.constant 0 : index
    %c0_3 = arith.constant 0 : index
    %2 = vector.load %arg3[%c0_2, %c0_3] : memref<8x64xf32, #tpu.memory_space<vmem>>, vector<8x64xf32>
    %3 = vector.shape_cast %2 : vector<8x64xf32> to vector<1x8x64xf32>
    %c0_4 = arith.constant 0 : index
    %c0_5 = arith.constant 0 : index
    %4 = vector.load %arg4[%c0_4, %c0_5] : memref<8x64xf32, #tpu.memory_space<vmem>>, vector<8x64xf32>
    %5 = vector.shape_cast %4 : vector<8x64xf32> to vector<1x8x64xf32>
    %6 = vector.broadcast %3 : vector<1x8x64xf32> to vector<4x8x64xf32>
    %7 = arith.mulf %0, %6 : vector<4x8x64xf32>
    %8 = vector.broadcast %5 : vector<1x8x64xf32> to vector<4x8x64xf32>
    %9 = arith.mulf %1, %8 : vector<4x8x64xf32>
    %10 = arith.addf %7, %9 : vector<4x8x64xf32>
    %c0_6 = arith.constant 0 : index
    %c0_7 = arith.constant 0 : index
    %c0_8 = arith.constant 0 : index
    %11 = vector.load %arg5[%c0_6, %c0_7, %c0_8] : memref<4x8x64xf32, #tpu.memory_space<vmem>>, vector<4x8x64xf32>
    tpu.vector_store %arg5[%c0_6, %c0_7, %c0_8], %10 {strides = array<i32>} : memref<4x8x64xf32, #tpu.memory_space<vmem>>, vector<4x8x64xf32>,
    return
  }
  func.func @transform_0(%arg0: i32, %arg1: i32) -> (i32, i32, i32) {
    %c0_i32 = arith.constant 0 : i32
    %c0_i32_0 = arith.constant 0 : i32
    return %arg1, %arg0, %c0_i32 : i32, i32, i32
  }
  func.func @transform_1(%arg0: i32, %arg1: i32) -> (i32, i32) {
    %c0_i32 = arith.constant 0 : i32
    %c0_i32_0 = arith.constant 0 : i32
    return %arg0, %c0_i32 : i32, i32
  }
  func.func @transform_2(%arg0: i32, %arg1: i32) -> (i32, i32) {
    %c0_i32 = arith.constant 0 : i32
    %c0_i32_0 = arith.constant 0 : i32
    return %arg0, %c0_i32 : i32, i32
  }
  func.func @transform_3(%arg0: i32, %arg1: i32) -> (i32, i32, i32) {
    %c0_i32 = arith.constant 0 : i32
    %c0_i32_0 = arith.constant 0 : i32
    return %arg1, %arg0, %c0_i32 : i32, i32, i32
  }
}

</mosaic_0001>

<llo_original>
// kernel: tpu_custom_call.1
$region0: #{tpu_custom_call.1}
  #allocation0 [shape = 'u32[]', space=smem, size = 0x4, offset = 0x4, fixed_abs, tag = 'smem constant byte address 0x4 - core index']
  #allocation1 [shape = 'u32[144,128]{1,0:T(1,128)}', space=vmem, size = 0x12000, scoped, tag = 'internal scratch']
  %s0 = inlined_call_operand.hbm [shape: f32[8,8,64], index: 0, kind: input, shape index: {}]
  %s1 = inlined_call_operand.hbm [shape: f32[8,64], index: 1, kind: input, shape index: {}]
  %s2 = inlined_call_operand.hbm [shape: f32[8,64], index: 2, kind: input, shape index: {}]
  %s3 = inlined_call_operand.hbm [shape: f32[8,8,64], index: 3, kind: output, shape index: {}]
  %s4 = sld [smem:[#allocation0]]
  $region57: #{tpu_custom_call.1} parent=0
    _
  %s6 = ssub.s32 1, %s4
  %s7 = scalar_select 0, %s6, %s4
  $region1: #{tpu_custom_call.1} parent=0
    #allocation2 [shape = 'u8[32768]{0}', space=vmem, size = 0x8000, scoped, tag = 'input window, operand 0']
    #allocation3 [shape = 's32[2]{0}', space=sflag, size = 0x8, scoped, tag = 'scoped memory for tpu_custom_call.1']
    #allocation4 [shape = 's32[2]{0}', space=sflag, size = 0x8, scoped, tag = 'scoped memory for tpu_custom_call.1']
    #allocation5 [shape = 'u8[4096]{0}', space=vmem, size = 0x1000, scoped, tag = 'input window, operand 1, single buffered']
    #allocation6 [shape = 's32[1]{0}', space=sflag, size = 0x4, scoped, tag = 'scoped memory for tpu_custom_call.1']
    #allocation7 [shape = 'u8[4096]{0}', space=vmem, size = 0x1000, scoped, tag = 'input window, operand 2, single buffered']
    #allocation8 [shape = 'u8[32768]{0}', space=vmem, size = 0x8000, scoped, tag = 'output window, operand 0']
    %8 = vsyncpa [#allocation3], 0
    %s9 = scalar_lea.sflag [#allocation3], 1
    %10 = vsyncpa %s9, 0
    %11 = vsyncpa [#allocation6], 0
    %12 = vsyncpa [#allocation4], 0
    %s13 = scalar_lea.sflag [#allocation4], 1
    %14 = vsyncpa %s13, 0
    loop: start=0, step=1, limit=4
    $region2: #{tpu_custom_call.1} parent=1 // loop_pre_header
      _
    $region3: #{tpu_custom_call.1} parent=1 // loop_header
      %s16 = sphi 0, %s20
      %p17 = scmp.ge.s32.totalorder %s16, 4
      %s23 = sphi 0, %s35
      %s24 = sphi 0, %s31
      %s25 = sphi 0, %s23
      %s26 = sphi 0, %s24
      %s27 = sphi 0, %s25
      %s28 = sphi 0, %s26
      %s40 = sphi 0, %s42
      %s43 = sphi 0, %s40
      %s44 = sphi 0, %s43
      %s60 = sphi 0, %s44
      %s66 = sphi 0, %s68
      %s69 = sphi 0, %s66
      %s70 = sphi 0, %s69
      %s86 = sphi 0, %s70
      %s92 = sphi 0, %s94
      %s95 = sphi 0, %s92
      %s96 = sphi 0, %s95
      %s112 = sphi 0, %s96
      %s120 = sphi 0, %s122
      %s123 = sphi 0, %s120
      %s124 = sphi 0, %s123
      %s140 = sphi 0, %s124
    $region4: #{tpu_custom_call.1} parent=1 // loop_header_branch
      %19 = sbr.rel (%p17) target = $region8
    $region5: #{tpu_custom_call.1} parent=1 // loop_body
      %s21 = ssub.s32 %s16, 1
      %s22 = ssub.s32 %s16, 2
      %s29 = sadd.s32 1, %s24
      %p30 = scmp.ge.s32.totalorder %s29, 2
      %s31 = scalar_select %p30, 0, %s29
      %s32 = sadd.s32 1, %s23
      %s33 = scalar_select %p30, %s32, %s23
      %p34 = scmp.ge.s32.totalorder %s33, 1
      %s35 = scalar_select %p34, 0, %s33
      %s36 = ssub.s32 %s24, %s31
      %s37 = ssub.s32 %s23, %s35
      %s38 = sor.u32 %s36, %s37
      %p39 = scmp.eq.s32.totalorder %s38, 0
      %s41 = sadd.s32 %s40, 1
      %s42 = scalar_select %p39, %s40, %s41
      %p45 = pneg %p39
      %p46 = scmp.eq.s32.totalorder %s16, 1
      %p47 = por %p45, %p46
      %p48 = scmp.ne.s32.totalorder %s40, %s43
      %p49 = scmp.eq.s32.totalorder %s16, 0
      %p50 = por %p48, %p49
      %p51 = scmp.ne.s32.totalorder %s40, %s43
      %p52 = scmp.eq.s32.totalorder %s21, 1
      %p53 = por %p51, %p52
      %p54 = scmp.ne.s32.totalorder %s43, %s44
      %p55 = scmp.eq.s32.totalorder %s21, 0
      %p56 = por %p54, %p55
      %p57 = scmp.ne.s32.totalorder %s43, %s44
      %p58 = scmp.eq.s32.totalorder %s22, 1
      %p59 = por %p57, %p58
      %p61 = scmp.ne.s32.totalorder %s44, %s60
      %p62 = scmp.eq.s32.totalorder %s22, 0
      %p63 = por %p61, %p62
      %s64 = ssub.s32 %s23, %s35
      %p65 = scmp.eq.s32.totalorder %s64, 0
      %s67 = sadd.s32 %s66, 1
      %s68 = scalar_select %p65, %s66, %s67
      %p71 = pneg %p65
      %p72 = scmp.eq.s32.totalorder %s16, 1
      %p73 = por %p71, %p72
      %p74 = scmp.ne.s32.totalorder %s66, %s69
      %p75 = scmp.eq.s32.totalorder %s16, 0
      %p76 = por %p74, %p75
      %p77 = scmp.ne.s32.totalorder %s66, %s69
      %p78 = scmp.eq.s32.totalorder %s21, 1
      %p79 = por %p77, %p78
      %p80 = scmp.ne.s32.totalorder %s69, %s70
      %p81 = scmp.eq.s32.totalorder %s21, 0
      %p82 = por %p80, %p81
      %p83 = scmp.ne.s32.totalorder %s69, %s70
      %p84 = scmp.eq.s32.totalorder %s22, 1
      %p85 = por %p83, %p84
      %p87 = scmp.ne.s32.totalorder %s70, %s86
      %p88 = scmp.eq.s32.totalorder %s22, 0
      %p89 = por %p87, %p88
      %s90 = ssub.s32 %s23, %s35
      %p91 = scmp.eq.s32.totalorder %s90, 0
      %s93 = sadd.s32 %s92, 1
      %s94 = scalar_select %p91, %s92, %s93
      %p97 = pneg %p91
      %p98 = scmp.eq.s32.totalorder %s16, 1
      %p99 = por %p97, %p98
      %p100 = scmp.ne.s32.totalorder %s92, %s95
      %p101 = scmp.eq.s32.totalorder %s16, 0
      %p102 = por %p100, %p101
      %p103 = scmp.ne.s32.totalorder %s92, %s95
      %p104 = scmp.eq.s32.totalorder %s21, 1
      %p105 = por %p103, %p104
      %p106 = scmp.ne.s32.totalorder %s95, %s96
      %p107 = scmp.eq.s32.totalorder %s21, 0
      %p108 = por %p106, %p107
      %p109 = scmp.ne.s32.totalorder %s95, %s96
      %p110 = scmp.eq.s32.totalorder %s22, 1
      %p111 = por %p109, %p110
      %p113 = scmp.ne.s32.totalorder %s96, %s112
      %p114 = scmp.eq.s32.totalorder %s22, 0
      %p115 = por %p113, %p114
      %s116 = ssub.s32 %s24, %s31
      %s117 = ssub.s32 %s23, %s35
      %s118 = sor.u32 %s116, %s117
      %p119 = scmp.eq.s32.totalorder %s118, 0
      %s121 = sadd.s32 %s120, 1
      %s122 = scalar_select %p119, %s120, %s121
      %p125 = pneg %p119
      %p126 = scmp.eq.s32.totalorder %s16, 1
      %p127 = por %p125, %p126
      %p128 = scmp.ne.s32.totalorder %s120, %s123
      %p129 = scmp.eq.s32.totalorder %s16, 0
      %p130 = por %p128, %p129
      %p131 = scmp.ne.s32.totalorder %s120, %s123
      %p132 = scmp.eq.s32.totalorder %s21, 1
      %p133 = por %p131, %p132
      %p134 = scmp.ne.s32.totalorder %s123, %s124
      %p135 = scmp.eq.s32.totalorder %s21, 0
      %p136 = por %p134, %p135
      %p137 = scmp.ne.s32.totalorder %s123, %s124
      %p138 = scmp.eq.s32.totalorder %s22, 1
      %p139 = por %p137, %p138
      %p141 = scmp.ne.s32.totalorder %s124, %s140
      %p142 = scmp.eq.s32.totalorder %s22, 0
      %p143 = por %p141, %p142
      %p144 = scmp.le.s32.totalorder 1, %s16
      %p145 = scmp.lt.s32.totalorder %s16, 3
      %p146 = pnand %p144, %p145
      %p147 = pneg %p146
      // Predicated region
      $region9: #{tpu_custom_call.1} parent=5 // pred_check
        _
      $region10: #{tpu_custom_call.1} parent=5 // pred_check_branch
        %149 = sbr.rel (%p146) target = $region12
      $region11: #{tpu_custom_call.1} parent=5 // pred_region
        %s150 = ssub.s32 %s16, 1
        // Predicated region
        $region13: #{tpu_custom_call.1} parent=11 // pred_check
          %p151 = pneg %p82
        $region14: #{tpu_custom_call.1} parent=11 // pred_check_branch
          %153 = sbr.rel (%p151) target = $region16
        $region15: #{tpu_custom_call.1} parent=11 // pred_region
          %s155 = ssub.s32 128, 128
          %156 = vsyncadd [#allocation6], %s155
          %s157 = smul.addr %s25, 128
          %s158 = scalar_lea.hbm %s1, %s157
          %s160 = sshll.u32 [#allocation5], 4
          %s161 = int_to_ptr.vmem [resolvable:$true] %s160
          %163 = dma.hbm_to_vmem [thread:$0]  %s158, 128, %s161, [#allocation6]
        $region16: #{tpu_custom_call.1} parent=11 // pred_fallthru
          _
        // Predicated region
        $region17: #{tpu_custom_call.1} parent=11 // pred_check
          %p164 = pneg %p108
        $region18: #{tpu_custom_call.1} parent=11 // pred_check_branch
          %166 = sbr.rel (%p164) target = $region20
        $region19: #{tpu_custom_call.1} parent=11 // pred_region
          %s168 = ssub.s32 128, 128
          %169 = vsyncadd [#allocation6], %s168
          %s170 = smul.addr %s25, 128
          %s171 = scalar_lea.hbm %s2, %s170
          %s173 = sshll.u32 [#allocation7], 4
          %s174 = int_to_ptr.vmem [resolvable:$true] %s173
          %176 = dma.hbm_to_vmem [thread:$0]  %s171, 128, %s174, [#allocation6]
        $region20: #{tpu_custom_call.1} parent=11 // pred_fallthru
          _
      $region12: #{tpu_custom_call.1} parent=5 // pred_fallthru
        _
      %p177 = scmp.lt.s32.totalorder %s16, 2
      // Predicated region
      $region21: #{tpu_custom_call.1} parent=5 // pred_check
        %p178 = pneg %p177
      $region22: #{tpu_custom_call.1} parent=5 // pred_check_branch
        %180 = sbr.rel (%p178) target = $region24
      $region23: #{tpu_custom_call.1} parent=5 // pred_region
        // Predicated region
        $region25: #{tpu_custom_call.1} parent=23 // pred_check
          %p181 = pneg %p50
        $region26: #{tpu_custom_call.1} parent=23 // pred_check_branch
          %183 = sbr.rel (%p181) target = $region28
        $region27: #{tpu_custom_call.1} parent=23 // pred_region
          %s184 = sand.u32 %s40, 1
          %s185 = scalar_lea.sflag [#allocation3], %s184
          %s186 = sand.u32 %s40, 1
          %s187 = smul.addr %s186, 32
          %s188 = scalar_lea.vmem [#allocation2], %s187
          %s189 = smul.u32 4, %s24
          %s191 = ssub.s32 512, 512
          %192 = vsyncadd %s185, %s191
          %s193 = sadd.s32 %s23, %s189
          %s194 = smul.addr %s193, 128
          %s195 = scalar_lea.hbm %s0, %s194
          %s196 = sshll.u32 %s188, 4
          %s197 = int_to_ptr.vmem [resolvable:$true] %s196
          %202 = dma.hbm_to_vmem [thread:$0]  %s195, 512, %s197, %s185, 128, 128, 8
        $region28: #{tpu_custom_call.1} parent=23 // pred_fallthru
          _
      $region24: #{tpu_custom_call.1} parent=5 // pred_fallthru
        _
      %p203 = scmp.le.s32.totalorder 1, %s16
      %p204 = scmp.lt.s32.totalorder %s16, 3
      %p205 = pnand %p203, %p204
      %p206 = pneg %p205
      // Predicated region
      $region29: #{tpu_custom_call.1} parent=5 // pred_check
        _
      $region30: #{tpu_custom_call.1} parent=5 // pred_check_branch
        %208 = sbr.rel (%p205) target = $region32
      $region31: #{tpu_custom_call.1} parent=5 // pred_region
        %s209 = ssub.s32 %s16, 1
        %s210 = sand.u32 %s43, 1
        %s211 = scalar_lea.sflag [#allocation3], %s210
        %s212 = sand.u32 %s43, 1
        %s213 = smul.addr %s212, 32
        %s214 = scalar_lea.vmem [#allocation2], %s213
        // Predicated region
        $region33: #{tpu_custom_call.1} parent=31 // pred_check
          %p215 = pneg %p56
        $region34: #{tpu_custom_call.1} parent=31 // pred_check_branch
          %217 = sbr.rel (%p215) target = $region36
        $region35: #{tpu_custom_call.1} parent=31 // pred_region
          %218 = dma.done %s211, 512
        $region36: #{tpu_custom_call.1} parent=31 // pred_fallthru
          _
        // Predicated region
        $region37: #{tpu_custom_call.1} parent=31 // pred_check
          %p219 = pneg %p82
        $region38: #{tpu_custom_call.1} parent=31 // pred_check_branch
          %221 = sbr.rel (%p219) target = $region40
        $region39: #{tpu_custom_call.1} parent=31 // pred_region
          %222 = dma.done [#allocation6], 128
        $region40: #{tpu_custom_call.1} parent=31 // pred_fallthru
          _
        // Predicated region
        $region41: #{tpu_custom_call.1} parent=31 // pred_check
          %p223 = pneg %p108
        $region42: #{tpu_custom_call.1} parent=31 // pred_check_branch
          %225 = sbr.rel (%p223) target = $region44
        $region43: #{tpu_custom_call.1} parent=31 // pred_region
          %226 = dma.done [#allocation6], 128
        $region44: #{tpu_custom_call.1} parent=31 // pred_fallthru
          _
        %s227 = sand.u32 %s43, 1
        %s228 = scalar_lea.sflag [#allocation3], %s227
        %s229 = sand.u32 %s43, 1
        %s230 = smul.addr %s229, 32
        %s231 = scalar_lea.vmem [#allocation2], %s230
        %p232 = pneg %p56
        %p233 = pneg %p53
        %p234 = pneg %p82
        %p235 = pneg %p79
        %p236 = pneg %p108
        %p237 = pneg %p105
        %p238 = pneg %p136
        %p239 = pneg %p133
        %s240 = sand.u32 %s123, 1
        %s241 = scalar_lea.sflag [#allocation4], %s240
        %s242 = sand.u32 %s123, 1
        %s243 = smul.addr %s242, 32
        %s244 = scalar_lea.vmem [#allocation8], %s243
        %s245 = smul.u32 4, %s26
        %s246 = smul.u32 4, %s26
        %v247 = vld [vmem:[%s214] sm:$0xff]
        %v248 = vld [vmem:[%s214 + $0x8] sm:$0xff]
        %v249 = vld [vmem:[%s214 + $0x10] sm:$0xff]
        %v250 = vld [vmem:[%s214 + $0x18] sm:$0xff]
        %vm251 = vcmask 1048064
        %252 = vrot.lane.b32.xlu0 %v247, 64
        %v253 = vpop.permute.xlu0 %252
        %v254 = vsel %vm251, %v253, %v247
        %255 = vrot.lane.b32.xlu0 %v248, 64
        %v256 = vpop.permute.xlu0 %255
        %v257 = vsel %vm251, %v256, %v248
        %258 = vrot.lane.b32.xlu0 %v249, 64
        %v259 = vpop.permute.xlu0 %258
        %v260 = vsel %vm251, %v259, %v249
        %261 = vrot.lane.b32.xlu0 %v250, 64
        %v262 = vpop.permute.xlu0 %261
        %v263 = vsel %vm251, %v262, %v250
        %264 = vrot.lane.b32.xlu0 %v254, 64
        %v265 = vpop.permute.xlu0 %264
        %266 = vrot.lane.b32.xlu0 %v257, 64
        %v267 = vpop.permute.xlu0 %266
        %268 = vrot.lane.b32.xlu0 %v260, 64
        %v269 = vpop.permute.xlu0 %268
        %270 = vrot.lane.b32.xlu0 %v263, 64
        %v271 = vpop.permute.xlu0 %270
        %v272 = vsel %vm251, %v265, %v247
        %v273 = vsel %vm251, %v267, %v248
        %v274 = vsel %vm251, %v269, %v249
        %v275 = vsel %vm251, %v271, %v250
        %v276 = vld [vmem:[#allocation5] sm:$0xff]
        %v277 = vld [vmem:[#allocation7] sm:$0xff]
        %v278 = vmul.f32 %v247, %v276
        %v279 = vmul.f32 %v248, %v276
        %v280 = vmul.f32 %v249, %v276
        %v281 = vmul.f32 %v250, %v276
        %283 = vrot.lane.b32.xlu0 %v277, 32
        %v284 = vpop.permute.xlu0 %283
        %v286 = vmul.f32 %v272, %v284
        %v287 = vmul.f32 %v273, %v284
        %v288 = vmul.f32 %v274, %v284
        %v289 = vmul.f32 %v275, %v284
        %294 = vrot.lane.b32.xlu0 %v286, 96
        %v295 = vpop.permute.xlu0 %294
        %296 = vrot.lane.b32.xlu0 %v287, 96
        %v297 = vpop.permute.xlu0 %296
        %298 = vrot.lane.b32.xlu0 %v288, 96
        %v299 = vpop.permute.xlu0 %298
        %300 = vrot.lane.b32.xlu0 %v289, 96
        %v301 = vpop.permute.xlu0 %300
        %v306 = vadd.f32 %v278, %v295
        %v307 = vadd.f32 %v279, %v297
        %v308 = vadd.f32 %v280, %v299
        %v309 = vadd.f32 %v281, %v301
        %vm310 = vcmask 523264
        %311 = vst.msk [vmem:[%s244] sm:$0xff] %vm310, %v306
        %312 = vst.msk [vmem:[%s244 + $0x8] sm:$0xff] %vm310, %v307
        %313 = vst.msk [vmem:[%s244 + $0x10] sm:$0xff] %vm310, %v308
        %314 = vst.msk [vmem:[%s244 + $0x18] sm:$0xff] %vm310, %v309
        %s315 = sand.u32 %s123, 1
        %s316 = scalar_lea.sflag [#allocation4], %s315
        %s317 = sand.u32 %s123, 1
        %s318 = smul.addr %s317, 32
        %s319 = scalar_lea.vmem [#allocation8], %s318
        // Predicated region
        $region45: #{tpu_custom_call.1} parent=31 // pred_check
          %p320 = pneg %p133
        $region46: #{tpu_custom_call.1} parent=31 // pred_check_branch
          %322 = sbr.rel (%p320) target = $region48
        $region47: #{tpu_custom_call.1} parent=31 // pred_region
          %s323 = smul.u32 4, %s26
          %s325 = ssub.s32 512, 512
          %326 = vsyncadd %s316, %s325
          %s327 = sadd.s32 %s25, %s323
          %s328 = smul.addr %s327, 128
          %s329 = scalar_lea.hbm %s3, %s328
          %s330 = sshll.u32 %s319, 4
          %s331 = int_to_ptr.vmem [resolvable:$true] %s330
          %336 = dma.vmem_to_hbm [thread:$0]  %s331, 512, %s329, %s316, 128, 128, 8
        $region48: #{tpu_custom_call.1} parent=31 // pred_fallthru
          _
      $region32: #{tpu_custom_call.1} parent=5 // pred_fallthru
        _
      %p337 = scmp.le.s32.totalorder 2, %s16
      // Predicated region
      $region49: #{tpu_custom_call.1} parent=5 // pred_check
        %p338 = pneg %p337
      $region50: #{tpu_custom_call.1} parent=5 // pred_check_branch
        %340 = sbr.rel (%p338) target = $region52
      $region51: #{tpu_custom_call.1} parent=5 // pred_region
        %s341 = ssub.s32 %s16, 2
        // Predicated region
        $region53: #{tpu_custom_call.1} parent=51 // pred_check
          %p342 = pneg %p139
        $region54: #{tpu_custom_call.1} parent=51 // pred_check_branch
          %344 = sbr.rel (%p342) target = $region56
        $region55: #{tpu_custom_call.1} parent=51 // pred_region
          %s345 = sand.u32 %s124, 1
          %s346 = scalar_lea.sflag [#allocation4], %s345
          %s347 = sand.u32 %s124, 1
          %s348 = smul.addr %s347, 32
          %s349 = scalar_lea.vmem [#allocation8], %s348
          %350 = dma.done %s346, 512
        $region56: #{tpu_custom_call.1} parent=51 // pred_fallthru
          _
      $region52: #{tpu_custom_call.1} parent=5 // pred_fallthru
        _
    $region6: #{tpu_custom_call.1} parent=1 // loop_footer
      %s20 = sadd.s32 1, %s16
    $region7: #{tpu_custom_call.1} parent=1 // loop_footer_branch
      %15 = sbr.rel target = $region3
    $region8: #{tpu_custom_call.1} parent=1 // loop_exit
      _
    %351 = vsyncpa [#allocation3], 1
    %s352 = scalar_lea.sflag [#allocation3], 1
    %353 = vsyncpa %s352, 1
    %354 = vsyncpa [#allocation6], 1
    %355 = vsyncpa [#allocation4], 1
    %s356 = scalar_lea.sflag [#allocation4], 1
    %357 = vsyncpa %s356, 1

</llo_original>
